<compile_context>
chip_gen: v5e
topology: v5e:2x2
jax: 0.10.0
libtpu: 0.0.40
codegen_flags: <defaults>
</compile_context>

<pallas_src>
import functools

import jax
import jax.numpy as jnp
from jax.experimental import pallas as pl
from jax.experimental.pallas import tpu as pltpu

_LANES = 128                      # boxes per row of the (rows, 512) view
_BOX = 4                          # floats per box (cx, cy, w, h)
_ROW = _LANES * _BOX              # 512 lanes per row: lane-dense, vreg-aligned
_MAX_BLOCK_ROWS = 512             # 512 rows x 512 lanes x 4 B = 1 MiB per input block
_MIN_BLOCK_ROWS = 256             # keep per-step DMAs >= ~0.5 MiB
_TARGET_BLOCKS = 4                # >= 2 grid steps per v7x TensorCore on large inputs
_VMEM_LIMIT_BYTES = 32 * 1024 * 1024


def _round_up(x, m):
    return ((x + m - 1) // m) * m


# ----------------------------------------------------------------------------------
# pltpu.roll is expected to follow jnp.roll semantics (out[l] = in[l - shift]).
# Probe the hardware lowering once so the in-kernel de-interleave can never silently
# pick the wrong lanes; the result is cached for the lifetime of the process.
# ----------------------------------------------------------------------------------
_ROLL_LIKE_JNP = None


def _probe_roll_semantics():
    global _ROLL_LIKE_JNP
    if _ROLL_LIKE_JNP is None:
        def kern(x_ref, o_ref):
            o_ref[...] = pltpu.roll(x_ref[...], 1, axis=1)

        x = jnp.tile(jnp.arange(_LANES, dtype=jnp.int32)[None, :], (8, 1))
        y = pl.pallas_call(kern, out_shape=jax.ShapeDtypeStruct((8, _LANES), jnp.int32))(x)
        v = int(jax.device_get(y)[0, 1])
        if v == 0:          # jnp.roll([0..127], 1)[1] == 0
            _ROLL_LIKE_JNP = True
        elif v == 2:        # opposite convention: out[l] = in[l + shift]
            _ROLL_LIKE_JNP = False
        else:
            raise RuntimeError(f"unexpected pltpu.roll semantics (probe value {v})")
    return _ROLL_LIKE_JNP


# ----------------------------------------------------------------------------------
# Kernel math on interleaved (rows, 512) tiles
# ----------------------------------------------------------------------------------
def _interleaved_loss(p, t, loss_type, jnp_roll):
    """IoU / GIoU loss on (TM, 512) tiles holding 128 cxcywh boxes per row.

    Lane layout per box b: [cx, cy, w, h] at lanes 4b .. 4b+3.  Cross-lane alignment
    uses pltpu.roll (XLU slot, idle otherwise).  The per-box loss lands on lane 4b;
    the other lanes hold don't-care values (possibly inf/nan) that callers must
    ignore or mask.
    """
    size = p.shape[-1]
    ax = p.ndim - 1

    def shl(x, k):
        # shl(x, k)[..., l] == x[..., (l + k) % size]
        shift = (size - k) % size if jnp_roll else k
        return pltpu.roll(x, shift, axis=ax)

    pe = shl(p, 2)                      # (w, h) aligned onto the (cx, cy) lanes
    te = shl(t, 2)
    peh = pe * 0.5
    teh = te * 0.5
    p_lo = p - peh
    p_hi = p + peh
    t_lo = t - teh
    t_hi = t + teh

    tl = jnp.maximum(p_lo, t_lo)
    br = jnp.minimum(p_hi, t_hi)
    g = jnp.where(tl < br, br - tl, 0.0)   # per-axis overlap, zeroed when empty (folds `en`)
    area_i = g * shl(g, 1)                 # lane 4b: I_x * I_y * en
    area_p = pe * shl(pe, 1)               # lane 4b: w_p * h_p
    area_g = te * shl(te, 1)               # lane 4b: w_g * h_g
    area_u = area_p + area_g - area_i
    iou = area_i / (area_u + 1e-16)        # exact f32 division, as in the reference

    if loss_type == "iou":
        return 1.0 - iou * iou
    if loss_type == "giou":
        c_lo = jnp.minimum(p_lo, t_lo)
        c_hi = jnp.maximum(p_hi, t_hi)
        span = c_hi - c_lo
        area_c = span * shl(span, 1)       # lane 4b: enclosing-box area
        giou = iou - (area_c - area_u) / jnp.maximum(area_c, 1e-16)
        return 1.0 - jnp.clip(giou, -1.0, 1.0)
    raise ValueError(f"unknown loss_type: {loss_type}")


def _iou_sum_kernel(p_ref, t_ref, out_ref, *, loss_type, n_elems, block_rows, jnp_roll):
    """Per-block partial sums; each grid step owns its own (8, 512) output tile."""
    i = pl.program_id(0)
    loss = _interleaved_loss(p_ref[...], t_ref[...], loss_type, jnp_roll)

    def fold(x):
        # (block_rows, 512) -> (8, 512) sublane-group fold (rule-compliant tile).
        return jnp.sum(x.reshape(block_rows // 8, 8, _ROW), axis=0)

    last = pl.num_programs(0) - 1

    @pl.when(i != last)
    def _():
        # Hot path: no ragged tail here, accumulate unmasked.
        out_ref[...] = fold(loss)

    @pl.when(i == last)
    def _():
        # Only the last block can contain padded boxes / out-of-bounds rows.
        row = jax.lax.broadcasted_iota(jnp.int32, loss.shape, 0)
        lane = jax.lax.broadcasted_iota(jnp.int32, loss.shape, 1)
        elem = (i * block_rows + row) * _ROW + lane
        out_ref[...] = fold(jnp.where(elem < n_elems, loss, 0.0))


def _iou_none_kernel(p_ref, t_ref, out_ref, *, loss_type, jnp_roll):
    """Elementwise losses, compacted to a dense (TM, 128) tile on the idle MXU."""
    loss = _interleaved_loss(p_ref[...], t_ref[...], loss_type, jnp_roll)   # (TM, 512)

    # Zero the don't-care lanes first so a stray inf/nan there can never poison the
    # selection matmul (0 * inf == nan).
    lane = jax.lax.broadcasted_iota(jnp.int32, loss.shape, 1)
    loss = jnp.where(lane % _BOX == 0, loss, 0.0)

    # Compact lanes 0, 4, 8, ... onto a dense 128-lane output: sel[l, b] = (l == 4b).
    # precision=HIGHEST keeps the pass-through accurate to ~1 ulp (default TPU matmul
    # precision would round the values through bf16).
    src = jax.lax.broadcasted_iota(jnp.int32, (_ROW, _LANES), 0)
    dst = jax.lax.broadcasted_iota(jnp.int32, (_ROW, _LANES), 1)
    sel = (src == dst * _BOX).astype(jnp.float32)
    out_ref[...] = jnp.dot(loss, sel,
                           precision=jax.lax.Precision.HIGHEST,
                           preferred_element_type=jnp.float32)


# ----------------------------------------------------------------------------------
# Wrapper
# ----------------------------------------------------------------------------------
def _choose_block_rows(rows, max_block_rows):
    max_block_rows = max(8, (int(max_block_rows) // 8) * 8)
    if rows <= 2 * _MIN_BLOCK_ROWS:
        # Small problem: a single block (per-step overhead would dominate a split).
        return min(max_block_rows, _round_up(rows, 8))
    tm = _round_up(-(-rows // _TARGET_BLOCKS), 8)       # aim for >= _TARGET_BLOCKS steps
    return min(max_block_rows, max(_MIN_BLOCK_ROWS, tm))


def _as_rows(boxes, rows):
    """(n, 4) cxcywh boxes -> (rows, 512) interleaved rows; free when n % 128 == 0."""
    flat = boxes.reshape(-1)
    pad = rows * _ROW - flat.shape[0]
    if pad:
        flat = jnp.pad(flat, (0, pad))
    return flat.reshape(rows, _ROW)


def iou_loss(pred, target, reduction="none", loss_type="iou", *,
             max_block_rows=_MAX_BLOCK_ROWS):
    """Pallas TPU implementation of IOUloss.forward (cx, cy, w, h boxes)."""
    assert pred.shape[0] == target.shape[0]
    pred = pred.reshape(-1, _BOX).astype(jnp.float32)
    target = target.reshape(-1, _BOX).astype(jnp.float32)
    n = pred.shape[0]
    jnp_roll = _probe_roll_semantics()

    rows = -(-n // _LANES)                          # 128 boxes (512 floats) per row
    if n % _LANES != 0:
        # Padding is needed anyway; round the row count to a tile-friendly multiple
        # of 8 at no extra cost.  When n % 128 == 0 the reshape below is a free view.
        rows = _round_up(rows, 8)
    p2d = _as_rows(pred, rows)
    t2d = _as_rows(target, rows)

    tm = _choose_block_rows(rows, max_block_rows)
    num_blocks = -(-rows // tm)
    in_specs = [pl.BlockSpec((tm, _ROW), lambda i: (i, 0)),
                pl.BlockSpec((tm, _ROW), lambda i: (i, 0))]
    cparams = pltpu.CompilerParams(dimension_semantics=("parallel",),
                                   vmem_limit_bytes=_VMEM_LIMIT_BYTES)

    if reduction in ("mean", "sum"):
        partials = pl.pallas_call(
            functools.partial(_iou_sum_kernel, loss_type=loss_type, n_elems=_BOX * n,
                              block_rows=tm, jnp_roll=jnp_roll),
            out_shape=jax.ShapeDtypeStruct((num_blocks * 8, _ROW), jnp.float32),
            grid_spec=pltpu.PrefetchScalarGridSpec(
                num_scalar_prefetch=0,
                grid=(num_blocks,),
                in_specs=in_specs,
                out_specs=pl.BlockSpec((8, _ROW), lambda i: (i, 0))),
            compiler_params=cparams,
        )(p2d, t2d)
        total = jnp.sum(partials[:, ::_BOX])        # box losses live on every 4th lane
        if reduction == "mean":
            return total / jnp.float32(n)           # divide by true n, not padded size
        return total

    # reduction == 'none' (or anything else, matching the PyTorch module's behavior)
    out = pl.pallas_call(
        functools.partial(_iou_none_kernel, loss_type=loss_type, jnp_roll=jnp_roll),
        out_shape=jax.ShapeDtypeStruct((rows, _LANES), jnp.float32),
        grid_spec=pltpu.PrefetchScalarGridSpec(
            num_scalar_prefetch=0,
            grid=(num_blocks,),
            in_specs=in_specs,
            out_specs=pl.BlockSpec((tm, _LANES), lambda i: (i, 0))),
        compiler_params=cparams,
    )(p2d, t2d)
    # NOTE: when n % 128 == 0 this reshape+slice is a free view; consumers that can
    # work on the padded (rows, 128) block directly may skip it entirely.
    return out.reshape(-1)[:n]


# ----------------------------------------------------------------------------------
# Pure-JAX reference (mirrors the PyTorch forward)
# ----------------------------------------------------------------------------------
def _iou_loss_ref(pred, target, reduction="none", loss_type="iou"):
    pred = pred.reshape(-1, 4).astype(jnp.float32)
    target = target.reshape(-1, 4).astype(jnp.float32)
    tl = jnp.maximum(pred[:, :2] - pred[:, 2:] / 2, target[:, :2] - target[:, 2:] / 2)
    br = jnp.minimum(pred[:, :2] + pred[:, 2:] / 2, target[:, :2] + target[:, 2:] / 2)
    area_p = jnp.prod(pred[:, 2:], axis=1)
    area_g = jnp.prod(target[:, 2:], axis=1)
    en = jnp.prod((tl < br).astype(tl.dtype), axis=1)
    area_i = jnp.prod(br - tl, axis=1) * en
    area_u = area_p + area_g - area_i
    iou = area_i / (area_u + 1e-16)
    if loss_type == "iou":
        loss = 1 - iou ** 2
    elif loss_type == "giou":
        c_tl = jnp.minimum(pred[:, :2] - pred[:, 2:] / 2, target[:, :2] - target[:, 2:] / 2)
        c_br = jnp.maximum(pred[:, :2] + pred[:, 2:] / 2, target[:, :2] + target[:, 2:] / 2)
        area_c = jnp.prod(c_br - c_tl, axis=1)
        giou = iou - (area_c - area_u) / jnp.maximum(area_c, 1e-16)
        loss = 1 - jnp.clip(giou, -1.0, 1.0)
    if reduction == "mean":
        loss = loss.mean()
    elif reduction == "sum":
        loss = loss.sum()
    return loss


if __name__ == "__main__":
    def make_boxes(k, n):
        k1, k2 = jax.random.split(k)
        xy = jax.random.uniform(k1, (n, 2), minval=0.0, maxval=10.0)
        wh = jax.random.uniform(k2, (n, 2), minval=0.5, maxval=4.0)
        return jnp.concatenate([xy, wh], axis=-1)

    failures = []

    # Small shapes implied by the module: (batch=2, anchors=16, 4) cxcywh boxes.
    B, A = 2, 16
    k1, k2 = jax.random.split(jax.random.PRNGKey(0))
    pred = make_boxes(k1, B * A).reshape(B, A, 4)
    target = make_boxes(k2, B * A).reshape(B, A, 4)
    for loss_type in ("iou", "giou"):
        for reduction in ("none", "mean", "sum"):
            out = jax.block_until_ready(iou_loss(pred, target, reduction, loss_type))
            ref = jax.block_until_ready(_iou_loss_ref(pred, target, reduction, loss_type))
            if not jnp.allclose(out, ref, atol=1e-5, rtol=1e-5):
                failures.append(("small", loss_type, reduction))

    # Ragged multi-block path: 2000 boxes, 8-row blocks -> 2 grid steps, padded tail.
    k3, k4 = jax.random.split(jax.random.PRNGKey(1))
    pred_b = make_boxes(k3, 2000)
    tgt_b = make_boxes(k4, 2000)
    for loss_type in ("iou", "giou"):
        for reduction in ("none", "sum", "mean"):
            out = jax.block_until_ready(
                iou_loss(pred_b, tgt_b, reduction, loss_type, max_block_rows=8))
            ref = jax.block_until_ready(_iou_loss_ref(pred_b, tgt_b, reduction, loss_type))
            if not jnp.allclose(out, ref, atol=1e-4, rtol=1e-4):
                failures.append(("ragged", loss_type, reduction))

    # Large zero-copy path: 131072 boxes (n % 128 == 0 -> free reshape, 4 grid steps).
    k5, k6 = jax.random.split(jax.random.PRNGKey(2))
    pred_l = make_boxes(k5, 128 * 1024)
    tgt_l = make_boxes(k6, 128 * 1024)
    for loss_type, reduction in (("iou", "sum"), ("giou", "none")):
        out = jax.block_until_ready(iou_loss(pred_l, tgt_l, reduction, loss_type))
        ref = jax.block_until_ready(_iou_loss_ref(pred_l, tgt_l, reduction, loss_type))
        if not jnp.allclose(out, ref, atol=1e-4, rtol=1e-4):
            failures.append(("large", loss_type, reduction))

    if failures:
        for f in failures:
            print("MISMATCH", f)
    else:
        print("KERNEL_OK")
</pallas_src>

<mosaic_0001>
module attributes {stable_mosaic.version = 11 : i64} {
  func.func @kern(%arg0: memref<8x128xi32, #tpu.memory_space<vmem>>, %arg1: memref<8x128xi32, #tpu.memory_space<vmem>>) attributes {dimension_semantics = [], scalar_prefetch = 0 : i64, scratch_operands = 0 : i64, tpu.core_type = #tpu.core_type<tc>} {
    %c0 = arith.constant 0 : index
    %c0_0 = arith.constant 0 : index
    %0 = vector.load %arg0[%c0, %c0_0] : memref<8x128xi32, #tpu.memory_space<vmem>>, vector<8x128xi32>
    %c1_i32 = arith.constant 1 : i32
    %1 = tpu.dynamic_rotate %0 by %c1_i32 dim 1 : vector<8x128xi32>, i32 -> vector<8x128xi32>
    %c0_1 = arith.constant 0 : index
    %c0_2 = arith.constant 0 : index
    %2 = vector.load %arg1[%c0_1, %c0_2] : memref<8x128xi32, #tpu.memory_space<vmem>>, vector<8x128xi32>
    tpu.vector_store %arg1[%c0_1, %c0_2], %1 {strides = array<i32>} : memref<8x128xi32, #tpu.memory_space<vmem>>, vector<8x128xi32>,
    return
  }
}

</mosaic_0001>

<llo_original>
// kernel: tpu_custom_call.1
$region0: #{tpu_custom_call.1}
  #allocation0 [shape = 'u32[]', space=smem, size = 0x4, offset = 0x4, fixed_abs, tag = 'smem constant byte address 0x4 - core index']
  #allocation1 [shape = 'u32[72,128]{1,0:T(1,128)}', space=vmem, size = 0x9000, scoped, tag = 'internal scratch']
  %s0 = inlined_call_operand.hbm [shape: s32[8,128], index: 0, kind: input, shape index: {}]
  %s1 = inlined_call_operand.hbm [shape: s32[8,128], index: 1, kind: output, shape index: {}]
  %s2 = sld [smem:[#allocation0]]
  $region18: #{tpu_custom_call.1} parent=0
    _
  %s4 = ssub.s32 1, %s2
  %s5 = scalar_select 0, %s4, %s2
  $region1: #{tpu_custom_call.1} parent=0
    #allocation2 [shape = 'u8[4096]{0}', space=vmem, size = 0x1000, scoped, tag = 'input window, operand 0, single buffered']
    #allocation3 [shape = 's32[1]{0}', space=sflag, size = 0x4, scoped, tag = 'scoped memory for tpu_custom_call.1']
    #allocation4 [shape = 's32[1]{0}', space=sflag, size = 0x4, scoped, tag = 'scoped memory for tpu_custom_call.1']
    #allocation5 [shape = 'u8[4096]{0}', space=vmem, size = 0x1000, scoped, tag = 'output window, operand 0, single buffered']
    %6 = vsyncpa [#allocation3], 0
    %7 = vsyncpa [#allocation4], 0
    // Predicated region
    $region2: #{tpu_custom_call.1} parent=1 // pred_check
      _
    $region3: #{tpu_custom_call.1} parent=1 // pred_check_branch
      %9 = sbr.rel (0) target = $region5
    $region4: #{tpu_custom_call.1} parent=1 // pred_region
      %11 = vsyncadd [#allocation3], 0
      %s13 = sshll.u32 %s0, 4
      %s14 = int_to_ptr.hbm [resolvable:$true] %s13
      %s15 = sshll.u32 [#allocation2], 4
      %s16 = int_to_ptr.vmem [resolvable:$true] %s15
      %18 = dma.hbm_to_vmem [thread:$0]  %s14, 128, %s16, [#allocation3]
    $region5: #{tpu_custom_call.1} parent=1 // pred_fallthru
      _
    // Predicated region
    $region6: #{tpu_custom_call.1} parent=1 // pred_check
      _
    $region7: #{tpu_custom_call.1} parent=1 // pred_check_branch
      %20 = sbr.rel (0) target = $region9
    $region8: #{tpu_custom_call.1} parent=1 // pred_region
      %22 = dma.done [#allocation3], 128
    $region9: #{tpu_custom_call.1} parent=1 // pred_fallthru
      _
    %v23 = vld [vmem:[#allocation2] sm:$0xff]
    %24 = vrot.lane.b32.xlu0 %v23, 1
    %v25 = vpop.permute.xlu0 %24
    %26 = vst [vmem:[#allocation5] sm:$0xff] %v25
    // Predicated region
    $region10: #{tpu_custom_call.1} parent=1 // pred_check
      _
    $region11: #{tpu_custom_call.1} parent=1 // pred_check_branch
      %28 = sbr.rel (0) target = $region13
    $region12: #{tpu_custom_call.1} parent=1 // pred_region
      %30 = vsyncadd [#allocation4], 0
      %s32 = sshll.u32 [#allocation5], 4
      %s33 = int_to_ptr.vmem [resolvable:$true] %s32
      %s34 = sshll.u32 %s1, 4
      %s35 = int_to_ptr.hbm [resolvable:$true] %s34
      %37 = dma.vmem_to_hbm [thread:$0]  %s33, 128, %s35, [#allocation4]
    $region13: #{tpu_custom_call.1} parent=1 // pred_fallthru
      _
    // Predicated region
    $region14: #{tpu_custom_call.1} parent=1 // pred_check
      _
    $region15: #{tpu_custom_call.1} parent=1 // pred_check_branch
      %39 = sbr.rel (0) target = $region17
    $region16: #{tpu_custom_call.1} parent=1 // pred_region
      %41 = dma.done [#allocation4], 128
    $region17: #{tpu_custom_call.1} parent=1 // pred_fallthru
      _
    %42 = vsyncpa [#allocation3], 1
    %43 = vsyncpa [#allocation4], 1

</llo_original>
